<compile_context>
chip_gen: v5e
topology: v5e:2x2
jax: 0.10.0
libtpu: 0.0.40
codegen_flags: <defaults>
</compile_context>

<pallas_src>
import jax
import jax.numpy as jnp
from jax.experimental import pallas as pl
from jax.experimental.pallas import tpu as pltpu


def _mlp_kernel(x_ref, w0_ref, b0_ref, ws_ref, bs_ref, o_ref):
    """Grid = (batch_tiles,).  Feature-major (transposed) layout.

    x_ref  : (d_in, TN)      f32   input tile, batch on lanes
    w0_ref : (H, d_in)       f32   first-layer weight (transposed), resident
    b0_ref : (H, 1)          f32   first-layer bias, resident
    ws_ref : (L-1, H, H)     bf16  remaining W^T stack (zero-padded), resident
    bs_ref : (L-1, H, 1)     f32   remaining bias stack, resident
    o_ref  : (d_out, TN)     f32   output tile (lane-dense row(s))
    """
    d_in = x_ref.shape[0]
    x = x_ref[...]                                     # (d_in, TN) f32

    # ---- layer 0: z = W0^T @ x + b0 via rank-1 VPU updates (K = d_in tiny) ---
    acc = w0_ref[:, 0:1] * x[0:1, :]                   # (H,1)*(1,TN) -> (H,TN)
    for k in range(1, d_in):                           # statically unrolled
        acc = acc + w0_ref[:, k:k + 1] * x[k:k + 1, :]
    a = jnp.tanh(acc + b0_ref[...]).astype(jnp.bfloat16)   # (H, TN) bf16

    # ---- remaining layers on the MXU (statically unrolled) -------------------
    n_rest = ws_ref.shape[0]
    for l in range(n_rest):
        z = jnp.dot(ws_ref[l], a, preferred_element_type=jnp.float32)  # (H, TN)
        z = z + bs_ref[l]                               # (H,1) lane-broadcast
        if l < n_rest - 1:
            a = jnp.tanh(z).astype(jnp.bfloat16)        # hidden: tanh
        else:
            o_ref[...] = z[:o_ref.shape[0], :]          # last: identity, row(s) 0..d_out


def pack_params(weights, biases):
    """One-time packing of the MLP parameters into kernel-resident stacks.

    weights[i]: (layers[i], layers[i+1])  (in, out);  biases[i]: (layers[i+1],)
    """
    assert len(weights) >= 2, "need at least one hidden layer"
    d_in = weights[0].shape[0]
    d_out = weights[-1].shape[1]
    H = max(w.shape[1] for w in weights)                # max feature width past input
    H = max(8, ((H + 7) // 8) * 8)                      # sublane multiple
    assert d_out <= H

    # layer 0: transposed (H, d_in) f32 (full precision for PINN coordinates)
    w0 = weights[0].astype(jnp.float32)                 # (d_in, h1)
    w0t = jnp.zeros((H, d_in), jnp.float32).at[: w0.shape[1], :].set(w0.T)
    b0 = jnp.zeros((H, 1), jnp.float32).at[: w0.shape[1], 0].set(
        biases[0].astype(jnp.float32))

    # remaining layers: stacked W^T zero-padded to (H, H), bf16 for the MXU
    L1 = len(weights) - 1
    ws = jnp.zeros((L1, H, H), jnp.float32)
    bs = jnp.zeros((L1, H, 1), jnp.float32)
    for i in range(L1):
        w = weights[i + 1].astype(jnp.float32)
        b = biases[i + 1].astype(jnp.float32)
        di, do = w.shape
        ws = ws.at[i, :do, :di].set(w.T)
        bs = bs.at[i, :do, 0].set(b)

    return dict(w0t=w0t, b0=b0, ws=ws.astype(jnp.bfloat16), bs=bs,
                d_in=d_in, d_out=d_out, H=H)


def mlp_forward(x, params, *, tn=4096):
    """x: (N, d_in) -> (N, d_out), matching NN.forward semantics."""
    assert tn % 128 == 0
    n, d_in = x.shape
    assert d_in == params["d_in"]
    d_out = params["d_out"]

    # batch lives on the lane axis: pad N up to a multiple of the lane tile
    tn_eff = min(tn, max(128, ((n + 127) // 128) * 128))
    n_pad = ((n + tn_eff - 1) // tn_eff) * tn_eff

    x_t = jnp.zeros((d_in, n_pad), jnp.float32).at[:, :n].set(
        x.astype(jnp.float32).T)

    grid = (n_pad // tn_eff,)

    out = pl.pallas_call(
        _mlp_kernel,
        out_shape=jax.ShapeDtypeStruct((d_out, n_pad), jnp.float32),
        grid_spec=pltpu.PrefetchScalarGridSpec(
            num_scalar_prefetch=0,
            grid=grid,
            in_specs=[
                pl.BlockSpec((d_in, tn_eff), lambda i: (0, i)),
                # parameters: constant block index across the batch grid -> resident
                pl.BlockSpec(params["w0t"].shape, lambda i: (0, 0)),
                pl.BlockSpec(params["b0"].shape, lambda i: (0, 0)),
                pl.BlockSpec(params["ws"].shape, lambda i: (0, 0, 0)),
                pl.BlockSpec(params["bs"].shape, lambda i: (0, 0, 0)),
            ],
            out_specs=pl.BlockSpec((d_out, tn_eff), lambda i: (0, i)),
        ),
        compiler_params=pltpu.CompilerParams(
            dimension_semantics=("parallel",)),
    )(x_t, params["w0t"], params["b0"], params["ws"], params["bs"])

    return out[:, :n].T                                  # (N, d_out)


def init_params(layers, key):
    """Xavier-normal weights (nn.init.xavier_normal_), zero biases.

    PyTorch Linear stores weight as (out, in); we keep (in, out) for x @ W."""
    weights, biases = [], []
    for i in range(len(layers) - 1):
        key, sub = jax.random.split(key)
        fan_in, fan_out = layers[i], layers[i + 1]
        std = (2.0 / (fan_in + fan_out)) ** 0.5
        w = std * jax.random.normal(sub, (fan_in, fan_out), dtype=jnp.float32)
        b = jnp.zeros((fan_out,), jnp.float32)
        weights.append(w)
        biases.append(b)
    return weights, biases


def reference_forward(x, weights, biases):
    a = x.astype(jnp.float32)
    for i in range(len(weights) - 1):
        a = jnp.tanh(a @ weights[i] + biases[i])
    return a @ weights[-1] + biases[-1]


if __name__ == "__main__":
    # shapes consistent with the PINN module: input = (x, t) pairs, scalar output
    layers = [2, 32, 32, 1]
    nu, dt = 0.01, 0.001  # not used by forward()

    key = jax.random.PRNGKey(0)
    key, kx1, kx2 = jax.random.split(key, 3)
    weights, biases = init_params(layers, key)
    params = pack_params(weights, biases)   # one-time packing (hot path stays clean)

    # small single-tile case
    x_small = jax.random.uniform(kx1, (8, layers[0]), dtype=jnp.float32)
    y_small = jax.block_until_ready(mlp_forward(x_small, params))
    y_small_ref = reference_forward(x_small, weights, biases)
    assert y_small.shape == (8, layers[-1])
    # bf16 MXU weights/activations in the hidden layers trade a little mantissa
    assert jnp.allclose(y_small, y_small_ref, atol=2e-2, rtol=2e-2), "mismatch (small)"

    # multi-tile + batch-padding case (exercises grid > 1)
    x_big = jax.random.uniform(kx2, (1000, layers[0]), dtype=jnp.float32)
    y_big = jax.block_until_ready(mlp_forward(x_big, params, tn=256))
    y_big_ref = reference_forward(x_big, weights, biases)
    assert y_big.shape == (1000, layers[-1])
    assert jnp.allclose(y_big, y_big_ref, atol=2e-2, rtol=2e-2), "mismatch (big)"

    print("KERNEL_OK")
</pallas_src>

<mosaic_0001>
module attributes {stable_mosaic.version = 11 : i64} {
  func.func @_mlp_kernel(%arg0: i32, %arg1: memref<2x128xf32, #tpu.memory_space<vmem>>, %arg2: memref<32x2xf32, #tpu.memory_space<vmem>>, %arg3: memref<32x1xf32, #tpu.memory_space<vmem>>, %arg4: memref<2x32x32xbf16, #tpu.memory_space<vmem>>, %arg5: memref<2x32x1xf32, #tpu.memory_space<vmem>>, %arg6: memref<1x128xf32, #tpu.memory_space<vmem>>) attributes {dimension_semantics = [#tpu.dimension_semantics<parallel>], iteration_bounds = array<i64: 1>, scalar_prefetch = 0 : i64, scratch_operands = 0 : i64, tpu.core_type = #tpu.core_type<tc>, window_params = [{transform_indices = @transform_0, window_bounds = array<i64: 2, 128>}, {pipeline_mode = #tpu.pipeline_mode<synchronous>, transform_indices = @transform_1, window_bounds = array<i64: 32, 2>}, {pipeline_mode = #tpu.pipeline_mode<synchronous>, transform_indices = @transform_2, window_bounds = array<i64: 32, 1>}, {pipeline_mode = #tpu.pipeline_mode<synchronous>, transform_indices = @transform_3, window_bounds = array<i64: 2, 32, 32>}, {pipeline_mode = #tpu.pipeline_mode<synchronous>, transform_indices = @transform_4, window_bounds = array<i64: 2, 32, 1>}, {transform_indices = @transform_5, window_bounds = array<i64: 1, 128>}]} {
    %c0 = arith.constant 0 : index
    %c0_0 = arith.constant 0 : index
    %0 = vector.load %arg1[%c0, %c0_0] : memref<2x128xf32, #tpu.memory_space<vmem>>, vector<2x128xf32>
    %c0_1 = arith.constant 0 : index
    %c0_2 = arith.constant 0 : index
    %1 = vector.load %arg2[%c0_1, %c0_2] : memref<32x2xf32, #tpu.memory_space<vmem>>, vector<32x1xf32>
    %2 = vector.extract_strided_slice %0 {offsets = [0, 0], sizes = [1, 128], strides = [1, 1]} : vector<2x128xf32> to vector<1x128xf32>
    %3 = vector.broadcast %1 : vector<32x1xf32> to vector<32x128xf32>
    %4 = vector.broadcast %2 : vector<1x128xf32> to vector<32x128xf32>
    %5 = arith.mulf %3, %4 : vector<32x128xf32>
    %c0_3 = arith.constant 0 : index
    %c1 = arith.constant 1 : index
    %6 = vector.load %arg2[%c0_3, %c1] : memref<32x2xf32, #tpu.memory_space<vmem>>, vector<32x1xf32>
    %7 = vector.extract_strided_slice %0 {offsets = [1, 0], sizes = [1, 128], strides = [1, 1]} : vector<2x128xf32> to vector<1x128xf32>
    %8 = vector.broadcast %6 : vector<32x1xf32> to vector<32x128xf32>
    %9 = vector.broadcast %7 : vector<1x128xf32> to vector<32x128xf32>
    %10 = arith.mulf %8, %9 : vector<32x128xf32>
    %11 = arith.addf %5, %10 : vector<32x128xf32>
    %c0_4 = arith.constant 0 : index
    %c0_5 = arith.constant 0 : index
    %12 = vector.load %arg3[%c0_4, %c0_5] : memref<32x1xf32, #tpu.memory_space<vmem>>, vector<32x1xf32>
    %13 = vector.broadcast %12 : vector<32x1xf32> to vector<32x128xf32>
    %14 = arith.addf %11, %13 : vector<32x128xf32>
    %15 = math.tanh %14 : vector<32x128xf32>
    %16 = arith.truncf %15 : vector<32x128xf32> to vector<32x128xbf16>
    %c0_6 = arith.constant 0 : index
    %c0_7 = arith.constant 0 : index
    %c0_8 = arith.constant 0 : index
    %17 = vector.load %arg4[%c0_6, %c0_7, %c0_8] : memref<2x32x32xbf16, #tpu.memory_space<vmem>>, vector<1x32x32xbf16>
    %18 = vector.shape_cast %17 : vector<1x32x32xbf16> to vector<32x32xbf16>
    %cst = arith.constant dense<0.000000e+00> : vector<32x128xf32>
    %19 = tpu.matmul %18, %16, %cst {dimension_numbers = #tpu.dot_dimension_numbers<[1], [0], [0], [1], [0, 0, 1, 1], [], []>} : vector<32x32xbf16>, vector<32x128xbf16>, vector<32x128xf32> -> vector<32x128xf32>
    %c0_9 = arith.constant 0 : index
    %c0_10 = arith.constant 0 : index
    %c0_11 = arith.constant 0 : index
    %20 = vector.load %arg5[%c0_9, %c0_10, %c0_11] : memref<2x32x1xf32, #tpu.memory_space<vmem>>, vector<1x32x1xf32>
    %21 = vector.shape_cast %20 : vector<1x32x1xf32> to vector<32x1xf32>
    %22 = vector.broadcast %21 : vector<32x1xf32> to vector<32x128xf32>
    %23 = arith.addf %19, %22 : vector<32x128xf32>
    %24 = math.tanh %23 : vector<32x128xf32>
    %25 = arith.truncf %24 : vector<32x128xf32> to vector<32x128xbf16>
    %c1_12 = arith.constant 1 : index
    %c0_13 = arith.constant 0 : index
    %c0_14 = arith.constant 0 : index
    %26 = vector.load %arg4[%c1_12, %c0_13, %c0_14] : memref<2x32x32xbf16, #tpu.memory_space<vmem>>, vector<1x32x32xbf16>
    %27 = vector.shape_cast %26 : vector<1x32x32xbf16> to vector<32x32xbf16>
    %cst_15 = arith.constant dense<0.000000e+00> : vector<32x128xf32>
    %28 = tpu.matmul %27, %25, %cst_15 {dimension_numbers = #tpu.dot_dimension_numbers<[1], [0], [0], [1], [0, 0, 1, 1], [], []>} : vector<32x32xbf16>, vector<32x128xbf16>, vector<32x128xf32> -> vector<32x128xf32>
    %c1_16 = arith.constant 1 : index
    %c0_17 = arith.constant 0 : index
    %c0_18 = arith.constant 0 : index
    %29 = vector.load %arg5[%c1_16, %c0_17, %c0_18] : memref<2x32x1xf32, #tpu.memory_space<vmem>>, vector<1x32x1xf32>
    %30 = vector.shape_cast %29 : vector<1x32x1xf32> to vector<32x1xf32>
    %31 = vector.broadcast %30 : vector<32x1xf32> to vector<32x128xf32>
    %32 = arith.addf %28, %31 : vector<32x128xf32>
    %33 = vector.extract_strided_slice %32 {offsets = [0, 0], sizes = [1, 128], strides = [1, 1]} : vector<32x128xf32> to vector<1x128xf32>
    %c0_19 = arith.constant 0 : index
    %c0_20 = arith.constant 0 : index
    %34 = vector.load %arg6[%c0_19, %c0_20] : memref<1x128xf32, #tpu.memory_space<vmem>>, vector<1x128xf32>
    tpu.vector_store %arg6[%c0_19, %c0_20], %33 {strides = array<i32>} : memref<1x128xf32, #tpu.memory_space<vmem>>, vector<1x128xf32>,
    return
  }
  func.func @transform_0(%arg0: i32) -> (i32, i32) {
    %c0_i32 = arith.constant 0 : i32
    %c0_i32_0 = arith.constant 0 : i32
    return %c0_i32, %arg0 : i32, i32
  }
  func.func @transform_1(%arg0: i32) -> (i32, i32) {
    %c0_i32 = arith.constant 0 : i32
    %c0_i32_0 = arith.constant 0 : i32
    %c0_i32_1 = arith.constant 0 : i32
    return %c0_i32, %c0_i32_0 : i32, i32
  }
  func.func @transform_2(%arg0: i32) -> (i32, i32) {
    %c0_i32 = arith.constant 0 : i32
    %c0_i32_0 = arith.constant 0 : i32
    %c0_i32_1 = arith.constant 0 : i32
    return %c0_i32, %c0_i32_0 : i32, i32
  }
  func.func @transform_3(%arg0: i32) -> (i32, i32, i32) {
    %c0_i32 = arith.constant 0 : i32
    %c0_i32_0 = arith.constant 0 : i32
    %c0_i32_1 = arith.constant 0 : i32
    %c0_i32_2 = arith.constant 0 : i32
    return %c0_i32, %c0_i32_0, %c0_i32_1 : i32, i32, i32
  }
  func.func @transform_4(%arg0: i32) -> (i32, i32, i32) {
    %c0_i32 = arith.constant 0 : i32
    %c0_i32_0 = arith.constant 0 : i32
    %c0_i32_1 = arith.constant 0 : i32
    %c0_i32_2 = arith.constant 0 : i32
    return %c0_i32, %c0_i32_0, %c0_i32_1 : i32, i32, i32
  }
  func.func @transform_5(%arg0: i32) -> (i32, i32) {
    %c0_i32 = arith.constant 0 : i32
    %c0_i32_0 = arith.constant 0 : i32
    return %c0_i32, %arg0 : i32, i32
  }
}

</mosaic_0001>

<llo_original>
// kernel: tpu_custom_call.1
$region0: #{tpu_custom_call.1}
  #allocation0 [shape = 'u32[]', space=smem, size = 0x4, offset = 0x4, fixed_abs, tag = 'smem constant byte address 0x4 - core index']
  #allocation1 [shape = 'u32[72,128]{1,0:T(1,128)}', space=vmem, size = 0x9000, scoped, tag = 'internal scratch']
  %s0 = inlined_call_operand.vmem [shape: f32[2,128], index: 0, kind: input, shape index: {}]
  %s1 = inlined_call_operand.vmem [shape: f32[32,2], index: 1, kind: input, shape index: {}]
  %s2 = inlined_call_operand.vmem [shape: f32[32,1], index: 2, kind: input, shape index: {}]
  %s3 = inlined_call_operand.vmem [shape: bf16[2,32,32], index: 3, kind: input, shape index: {}]
  %s4 = inlined_call_operand.vmem [shape: f32[2,32,1], index: 4, kind: input, shape index: {}]
  %s5 = inlined_call_operand.hbm [shape: f32[1,128], index: 5, kind: output, shape index: {}]
  %s6 = sld [smem:[#allocation0]]
  $region30: #{tpu_custom_call.1} parent=0
    _
  %s8 = ssub.s32 1, %s6
  %s9 = scalar_select 0, %s8, %s6
  $region1: #{tpu_custom_call.1} parent=0
    #allocation2 [shape = 'u8[512]{0}', space=vmem, size = 0x400, scoped, tag = 'output window, operand 0, single buffered']
    #allocation3 [shape = 's32[1]{0}', space=sflag, size = 0x4, scoped, tag = 'scoped memory for tpu_custom_call.1']
    %10 = vsyncpa [#allocation3], 0
    // Predicated region
    $region2: #{tpu_custom_call.1} parent=1 // pred_check
      _
    $region3: #{tpu_custom_call.1} parent=1 // pred_check_branch
      %12 = sbr.rel (0) target = $region5
    $region4: #{tpu_custom_call.1} parent=1 // pred_region
      _
    $region5: #{tpu_custom_call.1} parent=1 // pred_fallthru
      _
    // Predicated region
    $region6: #{tpu_custom_call.1} parent=1 // pred_check
      _
    $region7: #{tpu_custom_call.1} parent=1 // pred_check_branch
      %14 = sbr.rel (0) target = $region9
    $region8: #{tpu_custom_call.1} parent=1 // pred_region
      _
    $region9: #{tpu_custom_call.1} parent=1 // pred_fallthru
      _
    // Predicated region
    $region10: #{tpu_custom_call.1} parent=1 // pred_check
      _
    $region11: #{tpu_custom_call.1} parent=1 // pred_check_branch
      %16 = sbr.rel (0) target = $region13
    $region12: #{tpu_custom_call.1} parent=1 // pred_region
      _
    $region13: #{tpu_custom_call.1} parent=1 // pred_fallthru
      _
    // Predicated region
    $region14: #{tpu_custom_call.1} parent=1 // pred_check
      _
    $region15: #{tpu_custom_call.1} parent=1 // pred_check_branch
      %18 = sbr.rel (0) target = $region17
    $region16: #{tpu_custom_call.1} parent=1 // pred_region
      _
    $region17: #{tpu_custom_call.1} parent=1 // pred_fallthru
      _
    // Predicated region
    $region18: #{tpu_custom_call.1} parent=1 // pred_check
      _
    $region19: #{tpu_custom_call.1} parent=1 // pred_check_branch
      %20 = sbr.rel (0) target = $region21
    $region20: #{tpu_custom_call.1} parent=1 // pred_region
      _
    $region21: #{tpu_custom_call.1} parent=1 // pred_fallthru
      _
    %v22 = vld [vmem:[%s0] sm:$0x3]
    %v23 = vld [vmem:[%s1] sm:$0xff]
    %v24 = vld [vmem:[%s1 + $0x8] sm:$0xff]
    %v25 = vld [vmem:[%s1 + $0x10] sm:$0xff]
    %v26 = vld [vmem:[%s1 + $0x18] sm:$0xff]
    %28 = vset.pattern.permute.xlu0 0
    %29 = vperm.xlu0 %28, %v23
    %v30 = vpop.permute.xlu0 %29
    %33 = vset.pattern.permute.xlu0 0
    %34 = vperm.xlu0 %33, %v24
    %v35 = vpop.permute.xlu0 %34
    %38 = vset.pattern.permute.xlu0 0
    %39 = vperm.xlu0 %38, %v25
    %v40 = vpop.permute.xlu0 %39
    %43 = vset.pattern.permute.xlu0 0
    %44 = vperm.xlu0 %43, %v26
    %v45 = vpop.permute.xlu0 %44
    %v47 = vperm.slane %v22, 0
    %v48 = vmul.f32 %v30, %v47
    %v49 = vmul.f32 %v35, %v47
    %v50 = vmul.f32 %v40, %v47
    %v51 = vmul.f32 %v45, %v47
    %52 = vset.pattern.permute.xlu0 1
    %53 = vperm.xlu0 %52, %v23
    %v54 = vpop.permute.xlu0 %53
    %56 = vset.pattern.permute.xlu0 1
    %57 = vperm.xlu0 %56, %v24
    %v58 = vpop.permute.xlu0 %57
    %60 = vset.pattern.permute.xlu0 1
    %61 = vperm.xlu0 %60, %v25
    %v62 = vpop.permute.xlu0 %61
    %64 = vset.pattern.permute.xlu0 1
    %65 = vperm.xlu0 %64, %v26
    %v66 = vpop.permute.xlu0 %65
    %v68 = vperm.slane %v22, 1
    %v69 = vmul.f32 %v54, %v68
    %v70 = vmul.f32 %v58, %v68
    %v71 = vmul.f32 %v62, %v68
    %v72 = vmul.f32 %v66, %v68
    %v73 = vadd.f32 %v48, %v69
    %v74 = vadd.f32 %v49, %v70
    %v75 = vadd.f32 %v50, %v71
    %v76 = vadd.f32 %v51, %v72
    %v77 = vld [vmem:[%s2] sm:$0xff]
    %v78 = vld [vmem:[%s2 + $0x8] sm:$0xff]
    %v79 = vld [vmem:[%s2 + $0x10] sm:$0xff]
    %v80 = vld [vmem:[%s2 + $0x18] sm:$0xff]
    %82 = vset.pattern.permute.xlu0 0
    %83 = vperm.xlu0 %82, %v77
    %v84 = vpop.permute.xlu0 %83
    %87 = vset.pattern.permute.xlu0 0
    %88 = vperm.xlu0 %87, %v78
    %v89 = vpop.permute.xlu0 %88
    %92 = vset.pattern.permute.xlu0 0
    %93 = vperm.xlu0 %92, %v79
    %v94 = vpop.permute.xlu0 %93
    %97 = vset.pattern.permute.xlu0 0
    %98 = vperm.xlu0 %97, %v80
    %v99 = vpop.permute.xlu0 %98
    %v101 = vadd.f32 %v73, %v84
    %v102 = vadd.f32 %v74, %v89
    %v103 = vadd.f32 %v75, %v94
    %v104 = vadd.f32 %v76, %v99
    %v105 = vtanh.pop %v101
    %v106 = vtanh.pop %v102
    %v107 = vtanh.pop %v103
    %v108 = vtanh.pop %v104
    %v109 = vpack.c.bf16 %v106, %v105
    %v110 = vpack.c.bf16 %v108, %v107
    %v111 = vld [vmem:[%s3] sm:$0xf]
    %v112 = vld [vmem:[%s3 + $0x4] sm:$0xf]
    %v113 = vld [vmem:[%s3 + $0x8] sm:$0xf]
    %v114 = vld [vmem:[%s3 + $0xc] sm:$0xf]
    %v115 = vld [vmem:[%s4] sm:$0xff]
    %v116 = vld [vmem:[%s4 + $0x8] sm:$0xff]
    %v117 = vld [vmem:[%s4 + $0x10] sm:$0xff]
    %v118 = vld [vmem:[%s4 + $0x18] sm:$0xff]
    %120 = vset.pattern.permute.xlu0 0
    %121 = vperm.xlu0 %120, %v115
    %v122 = vpop.permute.xlu0 %121
    %125 = vset.pattern.permute.xlu0 0
    %126 = vperm.xlu0 %125, %v116
    %v127 = vpop.permute.xlu0 %126
    %130 = vset.pattern.permute.xlu0 0
    %131 = vperm.xlu0 %130, %v117
    %v132 = vpop.permute.xlu0 %131
    %135 = vset.pattern.permute.xlu0 0
    %136 = vperm.xlu0 %135, %v118
    %v137 = vpop.permute.xlu0 %136
    %v143 = vunpack.c.l.b16 %v111
    %v144 = vunpack.c.l.b16 %v112
    %v145 = vunpack.c.l.b16 %v113
    %v146 = vunpack.c.l.b16 %v114
    %v147 = vpack.c.b16 %v144, %v143
    %v148 = vpack.c.b16 %v146, %v145
    %vm149 = vcmask 261120
    %v151 = vsel %vm149, %v147, 0
    %v154 = vsel %vm149, %v148, 0
    %156 = vmatpush.bf16.msra.mxu0 0
    %157 = vmatpush.bf16.msra.mxu0 0
    %158 = vmatpush.bf16.msra.mxu0 0
    %159 = vmatpush.bf16.msra.mxu0 0
    %160 = vmatpush.bf16.msra.mxu0 0
    %161 = vmatpush.bf16.msra.mxu0 0
    %162 = vmatpush.bf16.msra.mxu0 %v110
    %163 = vmatpush.bf16.msra.mxu0 %v109
    %164 = vmatmul.bf16.gmra.mxu0 %v151
    %v165 = vpop.f32.mrf.mxu0
    %v166 = vadd.f32 %v122, %v165
    %v167 = vpop.f32.mrf.mxu0
    %v168 = vadd.f32 %v127, %v167
    %169 = vmatmul.bf16.gmra.mxu0 %v154
    %v170 = vpop.f32.mrf.mxu0
    %v171 = vadd.f32 %v132, %v170
    %v172 = vpop.f32.mrf.mxu0
    %v173 = vadd.f32 %v137, %v172
    %174 = vdwg.mxu0
    %v175 = vtanh.pop %v166
    %v176 = vtanh.pop %v168
    %v177 = vtanh.pop %v171
    %v178 = vtanh.pop %v173
    %v179 = vpack.c.bf16 %v176, %v175
    %v180 = vpack.c.bf16 %v178, %v177
    %s181 = scalar_lea.vmem %s3, 16
    %v182 = vld [vmem:[%s181] sm:$0xf]
    %v183 = vld [vmem:[%s181 + $0x4] sm:$0xf]
    %v184 = vld [vmem:[%s181 + $0x8] sm:$0xf]
    %v185 = vld [vmem:[%s181 + $0xc] sm:$0xf]
    %s186 = scalar_lea.vmem %s4, 32
    %v187 = vld [vmem:[%s186] sm:$0xff]
    %v188 = vld [vmem:[%s186 + $0x8] sm:$0xff]
    %v189 = vld [vmem:[%s186 + $0x10] sm:$0xff]
    %v190 = vld [vmem:[%s186 + $0x18] sm:$0xff]
    %192 = vset.pattern.permute.xlu0 0
    %193 = vperm.xlu0 %192, %v187
    %v194 = vpop.permute.xlu0 %193
    %197 = vset.pattern.permute.xlu0 0
    %198 = vperm.xlu0 %197, %v188
    %v199 = vpop.permute.xlu0 %198
    %201 = vset.pattern.permute.xlu0 0
    %202 = vperm.xlu0 %201, %v189
    %v203 = vpop.permute.xlu0 %202
    %205 = vset.pattern.permute.xlu0 0
    %206 = vperm.xlu0 %205, %v190
    %v207 = vpop.permute.xlu0 %206
    %v212 = vunpack.c.l.b16 %v182
    %v213 = vunpack.c.l.b16 %v183
    %v214 = vunpack.c.l.b16 %v184
    %v215 = vunpack.c.l.b16 %v185
    %v216 = vpack.c.b16 %v213, %v212
    %v217 = vpack.c.b16 %v215, %v214
    %v219 = vsel %vm149, %v216, 0
    %v222 = vsel %vm149, %v217, 0
    %224 = vmatpush.bf16.msra.mxu0 0
    %225 = vmatpush.bf16.msra.mxu0 0
    %226 = vmatpush.bf16.msra.mxu0 0
    %227 = vmatpush.bf16.msra.mxu0 0
    %228 = vmatpush.bf16.msra.mxu0 0
    %229 = vmatpush.bf16.msra.mxu0 0
    %230 = vmatpush.bf16.msra.mxu0 %v180
    %231 = vmatpush.bf16.msra.mxu0 %v179
    %232 = vmatmul.bf16.gmra.mxu0 %v219
    %v233 = vpop.f32.mrf.mxu0
    %v234 = vadd.f32 %v194, %v233
    %v235 = vpop.f32.mrf.mxu0
    %236 = vmatmul.bf16.gmra.mxu0 %v222
    %v237 = vpop.f32.mrf.mxu0
    %v238 = vpop.f32.mrf.mxu0
    %239 = vdwg.mxu0
    %240 = vst [vmem:[#allocation2] sm:$0x1] %v234
    // Predicated region
    $region22: #{tpu_custom_call.1} parent=1 // pred_check
      _
    $region23: #{tpu_custom_call.1} parent=1 // pred_check_branch
      %242 = sbr.rel (0) target = $region25
    $region24: #{tpu_custom_call.1} parent=1 // pred_region
      %244 = vsyncadd [#allocation3], 0
      %s246 = sshll.u32 [#allocation2], 4
      %s247 = int_to_ptr.vmem [resolvable:$true] %s246
      %s248 = sshll.u32 %s5, 4
      %s249 = int_to_ptr.hbm [resolvable:$true] %s248
      %251 = dma.vmem_to_hbm [thread:$0]  %s247, 16, %s249, [#allocation3]
    $region25: #{tpu_custom_call.1} parent=1 // pred_fallthru
      _
    // Predicated region
    $region26: #{tpu_custom_call.1} parent=1 // pred_check
      _
    $region27: #{tpu_custom_call.1} parent=1 // pred_check_branch
      %253 = sbr.rel (0) target = $region29
    $region28: #{tpu_custom_call.1} parent=1 // pred_region
      %255 = dma.done [#allocation3], 16
    $region29: #{tpu_custom_call.1} parent=1 // pred_fallthru
      _
    %256 = vsyncpa [#allocation3], 1

</llo_original>
